<compile_context>
chip_gen: v6e
topology: v6e:2x2x1
jax: 0.10.0
libtpu: 0.0.40
codegen_flags: <defaults>
</compile_context>

<pallas_src>
import jax
import jax.numpy as jnp
from jax.experimental import pallas as pl
from jax.experimental.pallas import tpu as pltpu


def _interaction_weight_kernel(x_ref, w_ref, b_ref, o_ref):
    # x_ref: (TILE_B, E) f32   w_ref: (E, TILE_F) f32   b_ref: (1, TILE_F) f32
    # Cast MXU operands to bf16 in VMEM; accumulate in f32; f32 epilogue.
    x = x_ref[...].astype(jnp.bfloat16)
    w = w_ref[...].astype(jnp.bfloat16)
    acc = jnp.dot(x, w, preferred_element_type=jnp.float32)
    y = jnp.tanh(acc + b_ref[...])          # bias broadcast once per tile, f32 math
    o_ref[...] = y.astype(o_ref.dtype)      # in-register cast just before the store


def _round_up(v, m):
    return ((v + m - 1) // m) * m


def _choose_tiles(B, F_pad):
    # Batch tile: whole B when small (full-dim blocks are always legal); otherwise a
    # large sublane-aligned tile so DMA bursts are long (~85% of HBM roofline at
    # >=512-wide tiles vs ~29% at 128) and per-step (~0.35 us) overhead is amortized.
    tile_b = B if B <= 1024 else _round_up(1024, 8)
    # Feature tile: keep the full (lane-padded) F resident whenever reasonable so
    # W / bias are DMA'd exactly once. Only tile F if it is genuinely huge.
    tile_f = F_pad if F_pad <= 4096 else 2048
    return tile_b, tile_f


def interaction_weight(x, w, b, in_size, out_size, out_dtype=jnp.bfloat16):
    """Pallas forward for MOF-NET-G InteractionWeight.

    x: (B, topo_emb_size) activations.
    w: (topo_emb_size, in_size*out_size) Linear weight, pre-transposed vs torch's
       (out, in) layout so the hot path is x @ W directly.
    b: (in_size*out_size,) Linear bias.
    Returns tanh(x @ w + b) reshaped to (B, in_size, out_size), in out_dtype
    (bf16 by default: this tensor is itself a matmul operand downstream; the
    bf16 operand/output rounding is an accepted ~3e-2 trade-off vs full f32).
    """
    B, E = x.shape
    F = in_size * out_size
    assert w.shape == (E, F) and b.shape == (F,)

    # Pad F to a multiple of 128 so the output BlockSpec stays lane-dense
    # (unmasked vst). Padded columns are sliced off after the call.
    F_pad = _round_up(F, 128)
    if F_pad != F:
        w = jnp.pad(w, ((0, 0), (0, F_pad - F)))
        b = jnp.pad(b, (0, F_pad - F))
    b2d = b.reshape(1, F_pad).astype(jnp.float32)

    tile_b, tile_f = _choose_tiles(B, F_pad)
    nf = F_pad // tile_f
    nb = pl.cdiv(B, tile_b)

    # Explicit VMEM budget: Pallas double-buffers every block. Cap at 40 MiB so a
    # single tiling compiles on v5e / v6e / v7x.
    x_bytes = jnp.dtype(x.dtype).itemsize
    w_bytes = jnp.dtype(w.dtype).itemsize
    out_bytes = jnp.dtype(out_dtype).itemsize
    tile_footprint = (tile_b * E * x_bytes          # x tile
                      + E * tile_f * w_bytes        # W tile (resident)
                      + tile_f * 4                  # bias tile (f32)
                      + tile_b * tile_f * out_bytes)  # out tile
    vmem_limit = int(min(max(2 * tile_footprint + (4 << 20), 8 << 20), 40 << 20))

    grid_spec = pl.GridSpec(
        # F axis OUTERMOST, B innermost: W / bias block indices are constant across
        # the inner batch sweep, so Pallas skips their DMA after the first fetch
        # (they are streamed exactly nf times total; once in the common nf == 1 case).
        grid=(nf, nb),
        in_specs=[
            pl.BlockSpec((tile_b, E), lambda j, i: (i, 0)),     # x
            pl.BlockSpec((E, tile_f), lambda j, i: (0, j)),     # W (VMEM-resident)
            pl.BlockSpec((1, tile_f), lambda j, i: (0, j)),     # bias
        ],
        out_specs=pl.BlockSpec((tile_b, tile_f), lambda j, i: (i, j)),
    )

    y = pl.pallas_call(
        _interaction_weight_kernel,
        out_shape=jax.ShapeDtypeStruct((B, F_pad), out_dtype),
        grid_spec=grid_spec,
        compiler_params=pltpu.CompilerParams(
            # Both axes are independent (E is never tiled) -> fully parallel.
            # TODO(synk): on v7x, mark the batch axis CORE_PARALLEL (or use
            # pl.core_map) to guarantee 2-TensorCore sharding of this mem-bound kernel.
            dimension_semantics=("parallel", "parallel"),
            vmem_limit_bytes=vmem_limit,
        ),
    )(x, w, b2d)

    if F_pad != F:
        y = y[:, :F]
    # Glue: reshape to (B, in_size, out_size) exactly like torch.reshape.
    return y.reshape(B, in_size, out_size)


if __name__ == "__main__":
    # Small shapes consistent with the module's forward.
    B = 2
    topo_emb_size = 32
    in_size = 8
    out_size = 16

    key = jax.random.PRNGKey(0)
    kx, kw, kb = jax.random.split(key, 3)

    x = jax.random.normal(kx, (B, topo_emb_size), dtype=jnp.float32)
    # PyTorch Linear stores (out, in); we store the transpose (in, out) so the
    # kernel hot path is x @ W directly.
    w = jax.random.normal(kw, (topo_emb_size, in_size * out_size), dtype=jnp.float32) * 0.1
    b = jax.random.normal(kb, (in_size * out_size,), dtype=jnp.float32) * 0.1

    weight = interaction_weight(x, w, b, in_size, out_size)
    jax.block_until_ready(weight)
    assert weight.shape == (B, in_size, out_size)
    assert weight.dtype == jnp.bfloat16

    out_f32 = weight.astype(jnp.float32)

    # Reference with the same bf16 operand rounding (matmul accumulates in f32);
    # remaining delta is the bf16 output rounding + MXU vs XLA dot ordering.
    xq = x.astype(jnp.bfloat16).astype(jnp.float32)
    wq = w.astype(jnp.bfloat16).astype(jnp.float32)
    ref_q = jnp.tanh(xq @ wq + b).reshape(B, in_size, out_size)
    assert jnp.allclose(out_f32, ref_q, atol=1.5e-2, rtol=1.5e-2)

    # Loose check vs. the full-f32 torch-equivalent reference.
    ref_f32 = jnp.tanh(x @ w + b).reshape(B, in_size, out_size)
    assert jnp.allclose(out_f32, ref_f32, atol=3e-2, rtol=3e-2)

    print("KERNEL_OK")
</pallas_src>

<mosaic_0001>
module attributes {stable_mosaic.version = 11 : i64} {
  func.func @_interaction_weight_kernel(%arg0: i32, %arg1: i32, %arg2: memref<2x32xf32, #tpu.memory_space<vmem>>, %arg3: memref<32x128xf32, #tpu.memory_space<vmem>>, %arg4: memref<1x128xf32, #tpu.memory_space<vmem>>, %arg5: memref<2x128xbf16, #tpu.memory_space<vmem>>) attributes {dimension_semantics = [#tpu.dimension_semantics<parallel>, #tpu.dimension_semantics<parallel>], iteration_bounds = array<i64: 1, 1>, scalar_prefetch = 0 : i64, scratch_operands = 0 : i64, tpu.core_type = #tpu.core_type<tc>, window_params = [{transform_indices = @transform_0, window_bounds = array<i64: 2, 32>}, {transform_indices = @transform_1, window_bounds = array<i64: 32, 128>}, {transform_indices = @transform_2, window_bounds = array<i64: 1, 128>}, {transform_indices = @transform_3, window_bounds = array<i64: 2, 128>}]} {
    %c0 = arith.constant 0 : index
    %c0_0 = arith.constant 0 : index
    %0 = vector.load %arg2[%c0, %c0_0] : memref<2x32xf32, #tpu.memory_space<vmem>>, vector<2x32xf32>
    %1 = arith.truncf %0 : vector<2x32xf32> to vector<2x32xbf16>
    %c0_1 = arith.constant 0 : index
    %c0_2 = arith.constant 0 : index
    %2 = vector.load %arg3[%c0_1, %c0_2] : memref<32x128xf32, #tpu.memory_space<vmem>>, vector<32x128xf32>
    %3 = arith.truncf %2 : vector<32x128xf32> to vector<32x128xbf16>
    %cst = arith.constant dense<0.000000e+00> : vector<2x128xf32>
    %4 = tpu.matmul %1, %3, %cst {dimension_numbers = #tpu.dot_dimension_numbers<[1], [0], [0], [1], [0, 0, 1, 1], [], []>} : vector<2x32xbf16>, vector<32x128xbf16>, vector<2x128xf32> -> vector<2x128xf32>
    %c0_3 = arith.constant 0 : index
    %c0_4 = arith.constant 0 : index
    %5 = vector.load %arg4[%c0_3, %c0_4] : memref<1x128xf32, #tpu.memory_space<vmem>>, vector<1x128xf32>
    %6 = vector.broadcast %5 : vector<1x128xf32> to vector<2x128xf32>
    %7 = arith.addf %4, %6 : vector<2x128xf32>
    %8 = math.tanh %7 : vector<2x128xf32>
    %9 = arith.truncf %8 : vector<2x128xf32> to vector<2x128xbf16>
    %c0_5 = arith.constant 0 : index
    %c0_6 = arith.constant 0 : index
    %10 = vector.load %arg5[%c0_5, %c0_6] : memref<2x128xbf16, #tpu.memory_space<vmem>>, vector<2x128xbf16>
    tpu.vector_store %arg5[%c0_5, %c0_6], %9 {strides = array<i32>} : memref<2x128xbf16, #tpu.memory_space<vmem>>, vector<2x128xbf16>,
    return
  }
  func.func @transform_0(%arg0: i32, %arg1: i32) -> (i32, i32) {
    %c0_i32 = arith.constant 0 : i32
    %c0_i32_0 = arith.constant 0 : i32
    return %arg1, %c0_i32 : i32, i32
  }
  func.func @transform_1(%arg0: i32, %arg1: i32) -> (i32, i32) {
    %c0_i32 = arith.constant 0 : i32
    %c0_i32_0 = arith.constant 0 : i32
    return %c0_i32, %arg0 : i32, i32
  }
  func.func @transform_2(%arg0: i32, %arg1: i32) -> (i32, i32) {
    %c0_i32 = arith.constant 0 : i32
    %c0_i32_0 = arith.constant 0 : i32
    return %c0_i32, %arg0 : i32, i32
  }
  func.func @transform_3(%arg0: i32, %arg1: i32) -> (i32, i32) {
    %c0_i32 = arith.constant 0 : i32
    return %arg1, %arg0 : i32, i32
  }
}

</mosaic_0001>

<llo_original>
// kernel: tpu_custom_call.1
$region0: #{tpu_custom_call.1}
  #allocation0 [shape = 'u32[]', space=smem, size = 0x4, offset = 0x4, fixed_abs, tag = 'smem constant byte address 0x4 - core index']
  #allocation1 [shape = 'u32[144,128]{1,0:T(1,128)}', space=vmem, size = 0x12000, scoped, tag = 'internal scratch']
  %s0 = inlined_call_operand.hbm [shape: f32[2,32], index: 0, kind: input, shape index: {}]
  %s1 = inlined_call_operand.hbm [shape: f32[32,128], index: 1, kind: input, shape index: {}]
  %s2 = inlined_call_operand.vmem [shape: f32[1,128], index: 2, kind: input, shape index: {}]
  %s3 = inlined_call_operand.hbm [shape: bf16[2,128], index: 3, kind: output, shape index: {}]
  %s4 = sld [smem:[#allocation0]]
  $region30: #{tpu_custom_call.1} parent=0
    _
  %s6 = ssub.s32 1, %s4
  %s7 = scalar_select 0, %s6, %s4
  $region1: #{tpu_custom_call.1} parent=0
    #allocation2 [shape = 'u8[1024]{0}', space=vmem, size = 0x400, scoped, tag = 'input window, operand 0, single buffered']
    #allocation3 [shape = 's32[1]{0}', space=sflag, size = 0x4, scoped, tag = 'scoped memory for tpu_custom_call.1']
    #allocation4 [shape = 's32[1]{0}', space=sflag, size = 0x4, scoped, tag = 'scoped memory for tpu_custom_call.1']
    #allocation5 [shape = 'u8[16384]{0}', space=vmem, size = 0x4000, scoped, tag = 'input window, operand 1, single buffered']
    #allocation6 [shape = 's32[1]{0}', space=sflag, size = 0x4, scoped, tag = 'scoped memory for tpu_custom_call.1']
    #allocation7 [shape = 'u8[512]{0}', space=vmem, size = 0x400, scoped, tag = 'output window, operand 0, single buffered']
    %8 = vsyncpa [#allocation3], 0
    %9 = vsyncpa [#allocation6], 0
    %10 = vsyncpa [#allocation4], 0
    // Predicated region
    $region2: #{tpu_custom_call.1} parent=1 // pred_check
      _
    $region3: #{tpu_custom_call.1} parent=1 // pred_check_branch
      %12 = sbr.rel (0) target = $region5
    $region4: #{tpu_custom_call.1} parent=1 // pred_region
      %s14 = ssub.s32 32, 32
      %15 = vsyncadd [#allocation3], %s14
      %s17 = sshll.u32 [#allocation2], 4
      %s18 = int_to_ptr.vmem [resolvable:$true] %s17
      %20 = dma.hbm_to_vmem [thread:$0]  %s0, 32, %s18, [#allocation3]
    $region5: #{tpu_custom_call.1} parent=1 // pred_fallthru
      _
    // Predicated region
    $region6: #{tpu_custom_call.1} parent=1 // pred_check
      _
    $region7: #{tpu_custom_call.1} parent=1 // pred_check_branch
      %22 = sbr.rel (0) target = $region9
    $region8: #{tpu_custom_call.1} parent=1 // pred_region
      %s24 = ssub.s32 512, 512
      %25 = vsyncadd [#allocation6], %s24
      %s26 = sshll.u32 [#allocation5], 4
      %s27 = int_to_ptr.vmem [resolvable:$true] %s26
      %32 = dma.hbm_to_vmem [thread:$0]  %s1, 512, %s27, [#allocation6], 128, 128, 8
    $region9: #{tpu_custom_call.1} parent=1 // pred_fallthru
      _
    // Predicated region
    $region10: #{tpu_custom_call.1} parent=1 // pred_check
      _
    $region11: #{tpu_custom_call.1} parent=1 // pred_check_branch
      %34 = sbr.rel (0) target = $region13
    $region12: #{tpu_custom_call.1} parent=1 // pred_region
      _
    $region13: #{tpu_custom_call.1} parent=1 // pred_fallthru
      _
    // Predicated region
    $region14: #{tpu_custom_call.1} parent=1 // pred_check
      _
    $region15: #{tpu_custom_call.1} parent=1 // pred_check_branch
      %36 = sbr.rel (0) target = $region17
    $region16: #{tpu_custom_call.1} parent=1 // pred_region
      %37 = dma.done [#allocation3], 32
    $region17: #{tpu_custom_call.1} parent=1 // pred_fallthru
      _
    // Predicated region
    $region18: #{tpu_custom_call.1} parent=1 // pred_check
      _
    $region19: #{tpu_custom_call.1} parent=1 // pred_check_branch
      %39 = sbr.rel (0) target = $region21
    $region20: #{tpu_custom_call.1} parent=1 // pred_region
      %40 = dma.done [#allocation6], 512
    $region21: #{tpu_custom_call.1} parent=1 // pred_fallthru
      _
    %v42 = vld [vmem:[#allocation2] sm:$0x3]
    %v43 = vpack.c.bf16 %v42, %v42
    %v44 = vld [vmem:[#allocation5] sm:$0xff]
    %v45 = vld [vmem:[#allocation5 + $0x8] sm:$0xff]
    %v46 = vld [vmem:[#allocation5 + $0x10] sm:$0xff]
    %v47 = vld [vmem:[#allocation5 + $0x18] sm:$0xff]
    %v48 = vpack.c.bf16 %v45, %v44
    %v49 = vpack.c.bf16 %v47, %v46
    %v50 = vld [vmem:[%s2] sm:$0x1]
    %v52 = vlaneseq
    %v53 = vshrl.u32 %v52, 7
    %v54 = vsub.s32 0, %v53
    %v55 = vrot.slane %v50, %v54
    %vm57 = vcmask 261120
    %v59 = vsel %vm57, %v43, 0
    %61 = vmatprep.subr.bf16.mxu0 0
    %62 = vmatpush1.bf16.msra.mxu0 0
    %63 = vmatprep.subr.bf16.mxu0 0
    %64 = vmatpush1.bf16.msra.mxu0 0
    %65 = vmatprep.subr.bf16.mxu0 0
    %66 = vmatpush1.bf16.msra.mxu0 0
    %67 = vmatprep.subr.bf16.mxu0 0
    %68 = vmatpush1.bf16.msra.mxu0 0
    %69 = vmatprep.subr.bf16.mxu0 0
    %70 = vmatpush1.bf16.msra.mxu0 0
    %71 = vmatprep.subr.bf16.mxu0 0
    %72 = vmatpush1.bf16.msra.mxu0 0
    %73 = vmatprep.subr.bf16.mxu0 0
    %74 = vmatpush1.bf16.msra.mxu0 %v49
    %75 = vmatprep.subr.bf16.mxu0 0
    %76 = vmatpush1.bf16.msra.mxu0 %v48
    %77 = vmatprep.subr.bf16.mxu0 0
    %78 = vmatpush2.bf16.msra.mxu0 0
    %79 = vmatprep.subr.bf16.mxu0 0
    %80 = vmatpush2.bf16.msra.mxu0 0
    %81 = vmatprep.subr.bf16.mxu0 0
    %82 = vmatpush2.bf16.msra.mxu0 0
    %83 = vmatprep.subr.bf16.mxu0 0
    %84 = vmatpush2.bf16.msra.mxu0 0
    %85 = vmatprep.subr.bf16.mxu0 0
    %86 = vmatpush2.bf16.msra.mxu0 0
    %87 = vmatprep.subr.bf16.mxu0 0
    %88 = vmatpush2.bf16.msra.mxu0 0
    %89 = vmatprep.subr.bf16.mxu0 0
    %90 = vmatpush2.bf16.msra.mxu0 0
    %91 = vmatprep.subr.bf16.mxu0 0
    %92 = vmatpush2.bf16.msra.mxu0 0
    %93 = vmatprep.mubr.bf16.mxu0 0
    %94 = vmatmul.mubr.bf16.gmra.mxu0 %v59
    %v95 = vpop.f32.mrf.mxu0
    %v96 = vadd.f32 %v55, %v95
    %v97 = vpop.f32.mrf.mxu0
    %v98 = vpop.f32.mrf.mxu0
    %v99 = vpop.f32.mrf.mxu0
    %100 = vdwg.mxu0
    %v101 = vtanh.pop %v96
    %v102 = vpack.c.bf16 %v101, %v101
    %103 = vst [vmem:[#allocation7] sm:$0x1] %v102
    // Predicated region
    $region22: #{tpu_custom_call.1} parent=1 // pred_check
      _
    $region23: #{tpu_custom_call.1} parent=1 // pred_check_branch
      %105 = sbr.rel (0) target = $region25
    $region24: #{tpu_custom_call.1} parent=1 // pred_region
      %s107 = ssub.s32 16, 16
      %108 = vsyncadd [#allocation4], %s107
      %s110 = sshll.u32 [#allocation7], 4
      %s111 = int_to_ptr.vmem [resolvable:$true] %s110
      %113 = dma.vmem_to_hbm [thread:$0]  %s111, 16, %s3, [#allocation4]
    $region25: #{tpu_custom_call.1} parent=1 // pred_fallthru
      _
    // Predicated region
    $region26: #{tpu_custom_call.1} parent=1 // pred_check
      _
    $region27: #{tpu_custom_call.1} parent=1 // pred_check_branch
      %115 = sbr.rel (0) target = $region29
    $region28: #{tpu_custom_call.1} parent=1 // pred_region
      %116 = dma.done [#allocation4], 16
    $region29: #{tpu_custom_call.1} parent=1 // pred_fallthru
      _
    %117 = vsyncpa [#allocation3], 1
    %118 = vsyncpa [#allocation6], 1
    %119 = vsyncpa [#allocation4], 1

</llo_original>
